<compile_context>
chip_gen: v5e
topology: v5e:2x2
jax: 0.10.0
libtpu: 0.0.40
codegen_flags: <defaults>
</compile_context>

<pallas_src>
import math

import jax
import jax.numpy as jnp
from jax import lax
from jax.experimental import pallas as pl
from jax.experimental.pallas import tpu as pltpu


def _round_up(x, m):
    return ((x + m - 1) // m) * m


def _choose_row_tile(n):
    """Tile of query rows: divides n; either == n (full dim) or a multiple of 8."""
    if n <= 128:
        return n
    for t in range(128, 0, -8):          # largest multiple of 8 dividing n, <= 128
        if n % t == 0:
            return t
    return n                             # fallback: single tile (always legal)


def _make_kernel(n, row_tile, heads, num_buckets, max_distance, w_pad):
    half_buckets = num_buckets // 2
    max_exact = half_buckets // 2
    log_scale = math.log(max_distance / max_exact)

    def kernel(emb_t_ref, out_ref, table_ref):
        # emb_t_ref : (heads, num_buckets) f32 — resident across all grid steps
        # out_ref   : (heads, row_tile, n) f32 — query rows on sublanes, keys on lanes
        # table_ref : (heads, w_pad)       f32 scratch — bias for every relative
        #             position this tile can touch.
        i0 = pl.program_id(0) * row_tile                 # first query row of tile

        # ---- 1. bucket math on the (n + row_tile - 1) distinct relative positions
        # local index d maps to rel_pos = d - (row_tile - 1) - i0, so that row r /
        # key j of this tile reads d = j + (row_tile - 1 - r)  (a static offset).
        d = lax.broadcasted_iota(jnp.int32, (1, w_pad), 1)
        rel_pos = d - (row_tile - 1) - i0

        # _relative_position_bucket (exact PyTorch semantics)
        neg = -rel_pos
        ret = (neg < 0).astype(jnp.int32) * half_buckets
        n_abs = jnp.abs(neg)
        is_small = n_abs < max_exact
        safe = jnp.maximum(n_abs, 1).astype(jnp.float32)   # masked where is_small
        val_if_large = max_exact + (
            jnp.log(safe / max_exact) / log_scale * (half_buckets - max_exact)
        ).astype(jnp.int32)                                # trunc == torch .long()
        val_if_large = jnp.minimum(val_if_large, half_buckets - 1)
        bucket = ret + jnp.where(is_small, n_abs, val_if_large)    # (1, w_pad) i32

        # ---- 2. embedding gather as a tiny one-hot matmul on the MXU
        bucket_iota = lax.broadcasted_iota(jnp.int32, (num_buckets, w_pad), 0)
        onehot = (bucket_iota == bucket).astype(jnp.float32)       # (buckets, w_pad)
        table_ref[...] = jnp.dot(
            emb_t_ref[...], onehot, preferred_element_type=jnp.float32
        )                                                          # (heads, w_pad)

        # ---- 3. expand to (heads, row_tile, n) via static sliding-window slices
        for r in range(row_tile):
            off = row_tile - 1 - r                                 # static offset
            row = table_ref[:, off:off + n]                        # (heads, n)
            out_ref[:, r:r + 1, :] = row[:, None, :]

    return kernel


def relative_position_bias(emb_weight, n, num_buckets=32, max_distance=128):
    """emb_weight: (num_buckets, heads) f32 embedding table. Returns (heads, n, n)."""
    heads = emb_weight.shape[1]
    row_tile = _choose_row_tile(n)
    num_tiles = n // row_tile
    w_pad = _round_up(n + row_tile - 1, 128)

    emb_t = emb_weight.T  # (heads, num_buckets) — parameter glue, not hot path

    kernel = _make_kernel(n, row_tile, heads, num_buckets, max_distance, w_pad)

    # Explicit VMEM budget: double-buffered output tile + resident embedding +
    # per-tile bias table / one-hot intermediates, with 2x headroom.
    out_tile_bytes = heads * row_tile * n * 4
    vmem_est = (2 * out_tile_bytes
                + 2 * heads * num_buckets * 4
                + heads * w_pad * 4
                + (num_buckets + 16) * w_pad * 4)
    vmem_limit = int(min(max(2 * vmem_est, 4 * 1024 * 1024), 64 * 1024 * 1024))

    return pl.pallas_call(
        kernel,
        out_shape=jax.ShapeDtypeStruct((heads, n, n), jnp.float32),
        grid_spec=pltpu.PrefetchScalarGridSpec(
            num_scalar_prefetch=0,
            grid=(num_tiles,),
            in_specs=[pl.BlockSpec((heads, num_buckets), lambda t: (0, 0))],
            out_specs=pl.BlockSpec((heads, row_tile, n), lambda t: (0, t, 0)),
            scratch_shapes=[pltpu.VMEM((heads, w_pad), jnp.float32)],
        ),
        compiler_params=pltpu.CompilerParams(
            dimension_semantics=("parallel",),
            vmem_limit_bytes=vmem_limit,
        ),
    )(emb_t)


def _reference(emb_weight, n, num_buckets=32, max_distance=128):
    """Plain-JAX reference mirroring the PyTorch forward, for verification."""
    q = jnp.arange(n)
    k = jnp.arange(n)
    rel_pos = k[None, :] - q[:, None]
    neg = -rel_pos
    half = num_buckets // 2
    ret = (neg < 0).astype(jnp.int32) * half
    n_abs = jnp.abs(neg)
    max_exact = half // 2
    is_small = n_abs < max_exact
    safe = jnp.maximum(n_abs, 1).astype(jnp.float32)
    val_if_large = max_exact + (
        jnp.log(safe / max_exact)
        / math.log(max_distance / max_exact)
        * (half - max_exact)
    ).astype(jnp.int32)
    val_if_large = jnp.minimum(val_if_large, half - 1)
    bucket = ret + jnp.where(is_small, n_abs, val_if_large)
    values = emb_weight[bucket]              # (n, n, heads)
    return jnp.transpose(values, (2, 0, 1))  # (heads, n, n)


if __name__ == "__main__":
    heads = 8
    num_buckets = 32
    max_distance = 128

    key = jax.random.PRNGKey(0)
    # nn.Embedding(num_buckets, heads).weight ~ N(0,1), deterministic init here
    emb_weight = jax.random.normal(key, (num_buckets, heads), dtype=jnp.float32)

    # n=8: module-consistent small case (single tile); n=256: exercises the
    # multi-tile grid path (row_tile=128, grid=(2,)).
    for n in (8, 256):
        out = relative_position_bias(emb_weight, n, num_buckets, max_distance)
        out = jax.block_until_ready(out)
        ref = _reference(emb_weight, n, num_buckets, max_distance)
        assert out.shape == (heads, n, n)
        assert jnp.allclose(out, ref, atol=1e-5), f"mismatch vs reference (n={n})"

    print("KERNEL_OK")
</pallas_src>

<mosaic_0001>
module attributes {stable_mosaic.version = 11 : i64} {
  func.func @kernel(%arg0: i32, %arg1: memref<8x32xf32, #tpu.memory_space<vmem>>, %arg2: memref<8x8x8xf32, #tpu.memory_space<vmem>>, %arg3: memref<8x128xf32, #tpu.memory_space<vmem>>) attributes {dimension_semantics = [#tpu.dimension_semantics<parallel>], iteration_bounds = array<i64: 1>, scalar_prefetch = 0 : i64, scratch_operands = 1 : i64, tpu.core_type = #tpu.core_type<tc>, window_params = [{pipeline_mode = #tpu.pipeline_mode<synchronous>, transform_indices = @transform_0, window_bounds = array<i64: 8, 32>}, {transform_indices = @transform_1, window_bounds = array<i64: 8, 8, 8>}]} {
    %c8_i32 = arith.constant 8 : i32
    %0 = arith.muli %arg0, %c8_i32 : i32
    %1 = tpu.iota {dimensions = array<i32: 1>} : vector<1x128xi32>
    %c7_i32 = arith.constant 7 : i32
    %2 = vector.broadcast %c7_i32 : i32 to vector<1x128xi32>
    %3 = arith.subi %1, %2 : vector<1x128xi32>
    %4 = vector.broadcast %0 : i32 to vector<1x128xi32>
    %5 = arith.subi %3, %4 : vector<1x128xi32>
    %c0_i32 = arith.constant 0 : i32
    %6 = vector.broadcast %c0_i32 : i32 to vector<1x128xi32>
    %7 = arith.subi %6, %5 : vector<1x128xi32>
    %c0_i32_0 = arith.constant 0 : i32
    %8 = vector.broadcast %c0_i32_0 : i32 to vector<1x128xi32>
    %9 = arith.cmpi slt, %7, %8 : vector<1x128xi32>
    %10 = arith.extui %9 : vector<1x128xi1> to vector<1x128xi32>
    %c16_i32 = arith.constant 16 : i32
    %11 = vector.broadcast %c16_i32 : i32 to vector<1x128xi32>
    %12 = arith.muli %10, %11 : vector<1x128xi32>
    %13 = math.absi %7 : vector<1x128xi32>
    %c8_i32_1 = arith.constant 8 : i32
    %14 = vector.broadcast %c8_i32_1 : i32 to vector<1x128xi32>
    %15 = arith.cmpi slt, %13, %14 : vector<1x128xi32>
    %c1_i32 = arith.constant 1 : i32
    %16 = vector.broadcast %c1_i32 : i32 to vector<1x128xi32>
    %17 = arith.maxsi %13, %16 : vector<1x128xi32>
    %18 = arith.sitofp %17 : vector<1x128xi32> to vector<1x128xf32>
    %cst = arith.constant 8.000000e+00 : f32
    %19 = vector.broadcast %cst : f32 to vector<1x128xf32>
    %20 = arith.divf %18, %19 : vector<1x128xf32>
    %21 = math.log %20 : vector<1x128xf32>
    %cst_2 = arith.constant 2.77258873 : f32
    %22 = vector.broadcast %cst_2 : f32 to vector<1x128xf32>
    %23 = arith.divf %21, %22 : vector<1x128xf32>
    %cst_3 = arith.constant 8.000000e+00 : f32
    %24 = vector.broadcast %cst_3 : f32 to vector<1x128xf32>
    %25 = arith.mulf %23, %24 : vector<1x128xf32>
    %26 = arith.fptosi %25 : vector<1x128xf32> to vector<1x128xi32>
    %c8_i32_4 = arith.constant 8 : i32
    %27 = vector.broadcast %c8_i32_4 : i32 to vector<1x128xi32>
    %28 = arith.addi %27, %26 : vector<1x128xi32>
    %c15_i32 = arith.constant 15 : i32
    %29 = vector.broadcast %c15_i32 : i32 to vector<1x128xi32>
    %30 = arith.minsi %28, %29 : vector<1x128xi32>
    %31 = arith.select %15, %13, %30 : vector<1x128xi1>, vector<1x128xi32>
    %32 = arith.addi %12, %31 : vector<1x128xi32>
    %33 = tpu.iota {dimensions = array<i32: 0>} : vector<32x128xi32>
    %34 = vector.broadcast %32 : vector<1x128xi32> to vector<32x128xi32>
    %35 = arith.cmpi eq, %33, %34 : vector<32x128xi32>
    %36 = arith.extui %35 : vector<32x128xi1> to vector<32x128xi32>
    %37 = arith.sitofp %36 : vector<32x128xi32> to vector<32x128xf32>
    %c0 = arith.constant 0 : index
    %c0_5 = arith.constant 0 : index
    %38 = vector.load %arg1[%c0, %c0_5] : memref<8x32xf32, #tpu.memory_space<vmem>>, vector<8x32xf32>
    %cst_6 = arith.constant dense<0.000000e+00> : vector<8x128xf32>
    %39 = tpu.matmul %38, %37, %cst_6 {dimension_numbers = #tpu.dot_dimension_numbers<[1], [0], [0], [1], [0, 0, 1, 1], [], []>} : vector<8x32xf32>, vector<32x128xf32>, vector<8x128xf32> -> vector<8x128xf32>
    %c0_7 = arith.constant 0 : index
    %c0_8 = arith.constant 0 : index
    %40 = vector.load %arg3[%c0_7, %c0_8] : memref<8x128xf32, #tpu.memory_space<vmem>>, vector<8x128xf32>
    tpu.vector_store %arg3[%c0_7, %c0_8], %39 {strides = array<i32>} : memref<8x128xf32, #tpu.memory_space<vmem>>, vector<8x128xf32>,
    %c0_9 = arith.constant 0 : index
    %c7 = arith.constant 7 : index
    %41 = vector.load %arg3[%c0_9, %c7] : memref<8x128xf32, #tpu.memory_space<vmem>>, vector<8x8xf32>
    %42 = vector.shape_cast %41 : vector<8x8xf32> to vector<8x1x8xf32>
    %c0_10 = arith.constant 0 : index
    %c0_11 = arith.constant 0 : index
    %c0_12 = arith.constant 0 : index
    %43 = vector.load %arg2[%c0_10, %c0_11, %c0_12] : memref<8x8x8xf32, #tpu.memory_space<vmem>>, vector<8x1x8xf32>
    tpu.vector_store %arg2[%c0_10, %c0_11, %c0_12], %42 {strides = array<i32>} : memref<8x8x8xf32, #tpu.memory_space<vmem>>, vector<8x1x8xf32>,
    %c0_13 = arith.constant 0 : index
    %c6 = arith.constant 6 : index
    %44 = vector.load %arg3[%c0_13, %c6] : memref<8x128xf32, #tpu.memory_space<vmem>>, vector<8x8xf32>
    %45 = vector.shape_cast %44 : vector<8x8xf32> to vector<8x1x8xf32>
    %c0_14 = arith.constant 0 : index
    %c1 = arith.constant 1 : index
    %c0_15 = arith.constant 0 : index
    %46 = vector.load %arg2[%c0_14, %c1, %c0_15] : memref<8x8x8xf32, #tpu.memory_space<vmem>>, vector<8x1x8xf32>
    tpu.vector_store %arg2[%c0_14, %c1, %c0_15], %45 {strides = array<i32>} : memref<8x8x8xf32, #tpu.memory_space<vmem>>, vector<8x1x8xf32>,
    %c0_16 = arith.constant 0 : index
    %c5 = arith.constant 5 : index
    %47 = vector.load %arg3[%c0_16, %c5] : memref<8x128xf32, #tpu.memory_space<vmem>>, vector<8x8xf32>
    %48 = vector.shape_cast %47 : vector<8x8xf32> to vector<8x1x8xf32>
    %c0_17 = arith.constant 0 : index
    %c2 = arith.constant 2 : index
    %c0_18 = arith.constant 0 : index
    %49 = vector.load %arg2[%c0_17, %c2, %c0_18] : memref<8x8x8xf32, #tpu.memory_space<vmem>>, vector<8x1x8xf32>
    tpu.vector_store %arg2[%c0_17, %c2, %c0_18], %48 {strides = array<i32>} : memref<8x8x8xf32, #tpu.memory_space<vmem>>, vector<8x1x8xf32>,
    %c0_19 = arith.constant 0 : index
    %c4 = arith.constant 4 : index
    %50 = vector.load %arg3[%c0_19, %c4] : memref<8x128xf32, #tpu.memory_space<vmem>>, vector<8x8xf32>
    %51 = vector.shape_cast %50 : vector<8x8xf32> to vector<8x1x8xf32>
    %c0_20 = arith.constant 0 : index
    %c3 = arith.constant 3 : index
    %c0_21 = arith.constant 0 : index
    %52 = vector.load %arg2[%c0_20, %c3, %c0_21] : memref<8x8x8xf32, #tpu.memory_space<vmem>>, vector<8x1x8xf32>
    tpu.vector_store %arg2[%c0_20, %c3, %c0_21], %51 {strides = array<i32>} : memref<8x8x8xf32, #tpu.memory_space<vmem>>, vector<8x1x8xf32>,
    %c0_22 = arith.constant 0 : index
    %c3_23 = arith.constant 3 : index
    %53 = vector.load %arg3[%c0_22, %c3_23] : memref<8x128xf32, #tpu.memory_space<vmem>>, vector<8x8xf32>
    %54 = vector.shape_cast %53 : vector<8x8xf32> to vector<8x1x8xf32>
    %c0_24 = arith.constant 0 : index
    %c4_25 = arith.constant 4 : index
    %c0_26 = arith.constant 0 : index
    %55 = vector.load %arg2[%c0_24, %c4_25, %c0_26] : memref<8x8x8xf32, #tpu.memory_space<vmem>>, vector<8x1x8xf32>
    tpu.vector_store %arg2[%c0_24, %c4_25, %c0_26], %54 {strides = array<i32>} : memref<8x8x8xf32, #tpu.memory_space<vmem>>, vector<8x1x8xf32>,
    %c0_27 = arith.constant 0 : index
    %c2_28 = arith.constant 2 : index
    %56 = vector.load %arg3[%c0_27, %c2_28] : memref<8x128xf32, #tpu.memory_space<vmem>>, vector<8x8xf32>
    %57 = vector.shape_cast %56 : vector<8x8xf32> to vector<8x1x8xf32>
    %c0_29 = arith.constant 0 : index
    %c5_30 = arith.constant 5 : index
    %c0_31 = arith.constant 0 : index
    %58 = vector.load %arg2[%c0_29, %c5_30, %c0_31] : memref<8x8x8xf32, #tpu.memory_space<vmem>>, vector<8x1x8xf32>
    tpu.vector_store %arg2[%c0_29, %c5_30, %c0_31], %57 {strides = array<i32>} : memref<8x8x8xf32, #tpu.memory_space<vmem>>, vector<8x1x8xf32>,
    %c0_32 = arith.constant 0 : index
    %c1_33 = arith.constant 1 : index
    %59 = vector.load %arg3[%c0_32, %c1_33] : memref<8x128xf32, #tpu.memory_space<vmem>>, vector<8x8xf32>
    %60 = vector.shape_cast %59 : vector<8x8xf32> to vector<8x1x8xf32>
    %c0_34 = arith.constant 0 : index
    %c6_35 = arith.constant 6 : index
    %c0_36 = arith.constant 0 : index
    %61 = vector.load %arg2[%c0_34, %c6_35, %c0_36] : memref<8x8x8xf32, #tpu.memory_space<vmem>>, vector<8x1x8xf32>
    tpu.vector_store %arg2[%c0_34, %c6_35, %c0_36], %60 {strides = array<i32>} : memref<8x8x8xf32, #tpu.memory_space<vmem>>, vector<8x1x8xf32>,
    %c0_37 = arith.constant 0 : index
    %c0_38 = arith.constant 0 : index
    %62 = vector.load %arg3[%c0_37, %c0_38] : memref<8x128xf32, #tpu.memory_space<vmem>>, vector<8x8xf32>
    %63 = vector.shape_cast %62 : vector<8x8xf32> to vector<8x1x8xf32>
    %c0_39 = arith.constant 0 : index
    %c7_40 = arith.constant 7 : index
    %c0_41 = arith.constant 0 : index
    %64 = vector.load %arg2[%c0_39, %c7_40, %c0_41] : memref<8x8x8xf32, #tpu.memory_space<vmem>>, vector<8x1x8xf32>
    tpu.vector_store %arg2[%c0_39, %c7_40, %c0_41], %63 {strides = array<i32>} : memref<8x8x8xf32, #tpu.memory_space<vmem>>, vector<8x1x8xf32>,
    return
  }
  func.func @transform_0(%arg0: i32) -> (i32, i32) {
    %c0_i32 = arith.constant 0 : i32
    %c0_i32_0 = arith.constant 0 : i32
    %c0_i32_1 = arith.constant 0 : i32
    return %c0_i32, %c0_i32_0 : i32, i32
  }
  func.func @transform_1(%arg0: i32) -> (i32, i32, i32) {
    %c0_i32 = arith.constant 0 : i32
    %c0_i32_0 = arith.constant 0 : i32
    %c0_i32_1 = arith.constant 0 : i32
    return %c0_i32, %arg0, %c0_i32_0 : i32, i32, i32
  }
}

</mosaic_0001>

<llo_original>
// kernel: tpu_custom_call.1
$region0: #{tpu_custom_call.1}
  #allocation0 [shape = 'u32[]', space=smem, size = 0x4, offset = 0x4, fixed_abs, tag = 'smem constant byte address 0x4 - core index']
  #allocation1 [shape = 'u32[72,128]{1,0:T(1,128)}', space=vmem, size = 0x9000, scoped, tag = 'internal scratch']
  #allocation2 [shape = 'f32[8,128]{1,0:T(8,128)}', space=vmem, size = 0x1000, scoped, tag = 'scratch operand']
  %s0 = inlined_call_operand.hbm [shape: f32[8,32], index: 0, kind: input, shape index: {}]
  %s1 = inlined_call_operand.hbm [shape: f32[8,8,8], index: 1, kind: output, shape index: {}]
  %s2 = sld [smem:[#allocation0]]
  $region18: #{tpu_custom_call.1} parent=0
    _
  %s4 = ssub.s32 1, %s2
  %s5 = scalar_select 0, %s4, %s2
  $region1: #{tpu_custom_call.1} parent=0
    #allocation3 [shape = 'u8[4096]{0}', space=vmem, size = 0x1000, scoped, tag = 'input window, operand 0, single buffered']
    #allocation4 [shape = 's32[1]{0}', space=sflag, size = 0x4, scoped, tag = 'scoped memory for tpu_custom_call.1']
    #allocation5 [shape = 's32[1]{0}', space=sflag, size = 0x4, scoped, tag = 'scoped memory for tpu_custom_call.1']
    #allocation6 [shape = 'u8[32768]{0}', space=vmem, size = 0x8000, scoped, tag = 'output window, operand 0, single buffered']
    %6 = vsyncpa [#allocation4], 0
    %7 = vsyncpa [#allocation5], 0
    // Predicated region
    $region2: #{tpu_custom_call.1} parent=1 // pred_check
      _
    $region3: #{tpu_custom_call.1} parent=1 // pred_check_branch
      %9 = sbr.rel (0) target = $region5
    $region4: #{tpu_custom_call.1} parent=1 // pred_region
      %11 = vsyncadd [#allocation4], 0
      %s13 = sshll.u32 %s0, 4
      %s14 = int_to_ptr.hbm [resolvable:$true] %s13
      %s15 = sshll.u32 [#allocation3], 4
      %s16 = int_to_ptr.vmem [resolvable:$true] %s15
      %18 = dma.hbm_to_vmem [thread:$0]  %s14, 128, %s16, [#allocation4]
    $region5: #{tpu_custom_call.1} parent=1 // pred_fallthru
      _
    // Predicated region
    $region6: #{tpu_custom_call.1} parent=1 // pred_check
      _
    $region7: #{tpu_custom_call.1} parent=1 // pred_check_branch
      %20 = sbr.rel (0) target = $region9
    $region8: #{tpu_custom_call.1} parent=1 // pred_region
      %22 = dma.done [#allocation4], 128
    $region9: #{tpu_custom_call.1} parent=1 // pred_fallthru
      _
    %s23 = smul.u32 0, 8
    %v24 = vlaneseq
    %v25 = vand.u32 %v24, 127
    %v26 = vsub.s32 %v25, 7
    %v27 = vstv %s23
    %v28 = vsub.s32 %v26, %v27
    %v29 = vsub.s32 0, %v28
    %vm30 = vcmp.lt.s32.totalorder %v29, 0
    %v31 = vsel %vm30, 1, 0
    %v32 = vmul.u32 %v31, 16
    %v33 = vsub.s32 0, %v29
    %v34 = vsel %vm30, %v33, %v29
    %vm35 = vcmp.lt.s32.totalorder %v34, 8
    %vm36 = vcmp.gt.s32.totalorder %v34, 1
    %v37 = vsel %vm36, %v34, 1
    %v38 = vcvt.s32.f32 %v37
    %v39 = vrcp.pop 8.0
    %v40 = vmul.f32 8.0, %v39
    %v41 = vsub.f32 1.0, %v40
    %v42 = vmul.f32 %v39, %v41
    %v43 = vadd.f32 %v39, %v42
    %vm44 = vweird.f32 %v39
    %v45 = vsel %vm44, %v39, %v43
    %v46 = vmul.f32 %v38, %v45
    %v47 = vlog2.pop %v46
    %v48 = vmul.f32 %v47, 0.6931472
    %v49 = vrcp.pop 2.7725887
    %v50 = vmul.f32 2.7725887, %v49
    %v51 = vsub.f32 1.0, %v50
    %v52 = vmul.f32 %v49, %v51
    %v53 = vadd.f32 %v49, %v52
    %vm54 = vweird.f32 %v49
    %v55 = vsel %vm54, %v49, %v53
    %v56 = vmul.f32 %v48, %v55
    %v57 = vmul.f32 %v56, 8.0
    %v58 = vcvt.f32.s32.to.zero.pseudo %v57
    %v59 = vadd.s32 %v58, 8
    %vm60 = vcmp.lt.s32.totalorder %v59, 15
    %v61 = vsel %vm60, %v59, 15
    %v62 = vsel %vm35, %v34, %v61
    %v63 = vadd.s32 %v32, %v62
    %v64 = vlaneseq
    %v65 = vshrl.u32 %v64, 7
    %v66 = vadd.s32 %v65, 8
    %v67 = vadd.s32 %v65, 16
    %v68 = vadd.s32 %v65, 24
    %vm69 = vcmp.eq.s32.totalorder %v65, %v63
    %vm70 = vcmp.eq.s32.totalorder %v66, %v63
    %vm71 = vcmp.eq.s32.totalorder %v67, %v63
    %vm72 = vcmp.eq.s32.totalorder %v68, %v63
    %v73 = vsel %vm69, 1, 0
    %v74 = vsel %vm70, 1, 0
    %v75 = vsel %vm71, 1, 0
    %v76 = vsel %vm72, 1, 0
    %v77 = vcvt.s32.f32 %v73
    %v78 = vcvt.s32.f32 %v74
    %v79 = vcvt.s32.f32 %v75
    %v80 = vcvt.s32.f32 %v76
    %v81 = vld [vmem:[#allocation3] sm:$0xff]
    %vm82 = vcmask 261120
    %v84 = vsel %vm82, %v81, 0
    %86 = vmatpush.msra.mxu0 0.0
    %87 = vmatpush.msra.mxu0 0.0
    %88 = vmatpush.msra.mxu0 0.0
    %89 = vmatpush.msra.mxu0 0.0
    %90 = vmatpush.msra.mxu0 0.0
    %91 = vmatpush.msra.mxu0 0.0
    %92 = vmatpush.msra.mxu0 0.0
    %93 = vmatpush.msra.mxu0 0.0
    %94 = vmatpush.msra.mxu0 0.0
    %95 = vmatpush.msra.mxu0 0.0
    %96 = vmatpush.msra.mxu0 0.0
    %97 = vmatpush.msra.mxu0 0.0
    %98 = vmatpush.msra.mxu0 %v80
    %99 = vmatpush.msra.mxu0 %v79
    %100 = vmatpush.msra.mxu0 %v78
    %101 = vmatpush.msra.mxu0 %v77
    %102 = vmatmul.f32.gmra.mxu0 %v84
    %v103 = vpop.f32.mrf.mxu0
    %v104 = vadd.f32 0.0, %v103
    %105 = vdwg.mxu0
    %106 = vst [vmem:[#allocation2] sm:$0xff] %v104
    %v107 = vld [vmem:[#allocation2] sm:$0xff]
    %v109 = vrot.slane %v107, 1
    %v110 = vrot.slane %v107, 2
    %v111 = vrot.slane %v107, 3
    %v112 = vrot.slane %v107, 4
    %v113 = vrot.slane %v107, 5
    %v114 = vrot.slane %v107, 6
    %v115 = vrot.slane %v107, 7
    %v116 = vperm.slane %v107, 0
    %v117 = vperm.slane %v109, 0
    %v118 = vperm.slane %v110, 0
    %v119 = vperm.slane %v111, 0
    %v120 = vperm.slane %v112, 0
    %v121 = vperm.slane %v113, 0
    %v122 = vperm.slane %v114, 0
    %v123 = vperm.slane %v115, 0
    %124 = vrot.lane.b32.xlu0 %v116, 121
    %v125 = vpop.permute.xlu0 %124
    %126 = vrot.lane.b32.xlu0 %v117, 121
    %v127 = vpop.permute.xlu0 %126
    %128 = vrot.lane.b32.xlu0 %v118, 121
    %v129 = vpop.permute.xlu0 %128
    %130 = vrot.lane.b32.xlu0 %v119, 121
    %v131 = vpop.permute.xlu0 %130
    %132 = vrot.lane.b32.xlu0 %v120, 121
    %v133 = vpop.permute.xlu0 %132
    %134 = vrot.lane.b32.xlu0 %v121, 121
    %v135 = vpop.permute.xlu0 %134
    %136 = vrot.lane.b32.xlu0 %v122, 121
    %v137 = vpop.permute.xlu0 %136
    %138 = vrot.lane.b32.xlu0 %v123, 121
    %v139 = vpop.permute.xlu0 %138
    %vm148 = vcmask 57344
    %149 = vst.msk [vmem:[#allocation6] sm:$0x1] %vm148, %v125
    %150 = vst.msk [vmem:[#allocation6 + $0x8] sm:$0x1] %vm148, %v127
    %151 = vst.msk [vmem:[#allocation6 + $0x10] sm:$0x1] %vm148, %v129
    %152 = vst.msk [vmem:[#allocation6 + $0x18] sm:$0x1] %vm148, %v131
    %153 = vst.msk [vmem:[#allocation6 + $0x20] sm:$0x1] %vm148, %v133
    %154 = vst.msk [vmem:[#allocation6 + $0x28] sm:$0x1] %vm148, %v135
    %155 = vst.msk [vmem:[#allocation6 + $0x30] sm:$0x1] %vm148, %v137
    %156 = vst.msk [vmem:[#allocation6 + $0x38] sm:$0x1] %vm148, %v139
    %v157 = vld [vmem:[#allocation2] sm:$0xff]
    %v159 = vrot.slane %v157, 1
    %v160 = vrot.slane %v157, 2
    %v161 = vrot.slane %v157, 3
    %v162 = vrot.slane %v157, 4
    %v163 = vrot.slane %v157, 5
    %v164 = vrot.slane %v157, 6
    %v165 = vrot.slane %v157, 7
    %v166 = vperm.slane %v157, 0
    %v167 = vperm.slane %v159, 0
    %v168 = vperm.slane %v160, 0
    %v169 = vperm.slane %v161, 0
    %v170 = vperm.slane %v162, 0
    %v171 = vperm.slane %v163, 0
    %v172 = vperm.slane %v164, 0
    %v173 = vperm.slane %v165, 0
    %174 = vrot.lane.b32.xlu0 %v166, 122
    %v175 = vpop.permute.xlu0 %174
    %176 = vrot.lane.b32.xlu0 %v167, 122
    %v177 = vpop.permute.xlu0 %176
    %178 = vrot.lane.b32.xlu0 %v168, 122
    %v179 = vpop.permute.xlu0 %178
    %180 = vrot.lane.b32.xlu0 %v169, 122
    %v181 = vpop.permute.xlu0 %180
    %182 = vrot.lane.b32.xlu0 %v170, 122
    %v183 = vpop.permute.xlu0 %182
    %184 = vrot.lane.b32.xlu0 %v171, 122
    %v185 = vpop.permute.xlu0 %184
    %186 = vrot.lane.b32.xlu0 %v172, 122
    %v187 = vpop.permute.xlu0 %186
    %188 = vrot.lane.b32.xlu0 %v173, 122
    %v189 = vpop.permute.xlu0 %188
    %198 = vst.msk [vmem:[#allocation6 + $0x1] sm:$0x1] %vm148, %v175
    %199 = vst.msk [vmem:[#allocation6 + $0x9] sm:$0x1] %vm148, %v177
    %200 = vst.msk [vmem:[#allocation6 + $0x11] sm:$0x1] %vm148, %v179
    %201 = vst.msk [vmem:[#allocation6 + $0x19] sm:$0x1] %vm148, %v181
    %202 = vst.msk [vmem:[#allocation6 + $0x21] sm:$0x1] %vm148, %v183
    %203 = vst.msk [vmem:[#allocation6 + $0x29] sm:$0x1] %vm148, %v185
    %204 = vst.msk [vmem:[#allocation6 + $0x31] sm:$0x1] %vm148, %v187
    %205 = vst.msk [vmem:[#allocation6 + $0x39] sm:$0x1] %vm148, %v189
    %v206 = vld [vmem:[#allocation2] sm:$0xff]
    %v208 = vrot.slane %v206, 1
    %v209 = vrot.slane %v206, 2
    %v210 = vrot.slane %v206, 3
    %v211 = vrot.slane %v206, 4
    %v212 = vrot.slane %v206, 5
    %v213 = vrot.slane %v206, 6
    %v214 = vrot.slane %v206, 7
    %v215 = vperm.slane %v206, 0
    %v216 = vperm.slane %v208, 0
    %v217 = vperm.slane %v209, 0
    %v218 = vperm.slane %v210, 0
    %v219 = vperm.slane %v211, 0
    %v220 = vperm.slane %v212, 0
    %v221 = vperm.slane %v213, 0
    %v222 = vperm.slane %v214, 0
    %223 = vrot.lane.b32.xlu0 %v215, 123
    %v224 = vpop.permute.xlu0 %223
    %225 = vrot.lane.b32.xlu0 %v216, 123
    %v226 = vpop.permute.xlu0 %225
    %227 = vrot.lane.b32.xlu0 %v217, 123
    %v228 = vpop.permute.xlu0 %227
    %229 = vrot.lane.b32.xlu0 %v218, 123
    %v230 = vpop.permute.xlu0 %229
    %231 = vrot.lane.b32.xlu0 %v219, 123
    %v232 = vpop.permute.xlu0 %231
    %233 = vrot.lane.b32.xlu0 %v220, 123
    %v234 = vpop.permute.xlu0 %233
    %235 = vrot.lane.b32.xlu0 %v221, 123
    %v236 = vpop.permute.xlu0 %235
    %237 = vrot.lane.b32.xlu0 %v222, 123
    %v238 = vpop.permute.xlu0 %237
    %247 = vst.msk [vmem:[#allocation6 + $0x2] sm:$0x1] %vm148, %v224
    %248 = vst.msk [vmem:[#allocation6 + $0xa] sm:$0x1] %vm148, %v226
    %249 = vst.msk [vmem:[#allocation6 + $0x12] sm:$0x1] %vm148, %v228
    %250 = vst.msk [vmem:[#allocation6 + $0x1a] sm:$0x1] %vm148, %v230
    %251 = vst.msk [vmem:[#allocation6 + $0x22] sm:$0x1] %vm148, %v232
    %252 = vst.msk [vmem:[#allocation6 + $0x2a] sm:$0x1] %vm148, %v234
    %253 = vst.msk [vmem:[#allocation6 + $0x32] sm:$0x1] %vm148, %v236
    %254 = vst.msk [vmem:[#allocation6 + $0x3a] sm:$0x1] %vm148, %v238
    %v255 = vld [vmem:[#allocation2] sm:$0xff]
    %v257 = vrot.slane %v255, 1
    %v258 = vrot.slane %v255, 2
    %v259 = vrot.slane %v255, 3
    %v260 = vrot.slane %v255, 4
    %v261 = vrot.slane %v255, 5
    %v262 = vrot.slane %v255, 6
    %v263 = vrot.slane %v255, 7
    %v264 = vperm.slane %v255, 0
    %v265 = vperm.slane %v257, 0
    %v266 = vperm.slane %v258, 0
    %v267 = vperm.slane %v259, 0
    %v268 = vperm.slane %v260, 0
    %v269 = vperm.slane %v261, 0
    %v270 = vperm.slane %v262, 0
    %v271 = vperm.slane %v263, 0
    %272 = vrot.lane.b32.xlu0 %v264, 124
    %v273 = vpop.permute.xlu0 %272
    %274 = vrot.lane.b32.xlu0 %v265, 124
    %v275 = vpop.permute.xlu0 %274
    %276 = vrot.lane.b32.xlu0 %v266, 124
    %v277 = vpop.permute.xlu0 %276
    %278 = vrot.lane.b32.xlu0 %v267, 124
    %v279 = vpop.permute.xlu0 %278
    %280 = vrot.lane.b32.xlu0 %v268, 124
    %v281 = vpop.permute.xlu0 %280
    %282 = vrot.lane.b32.xlu0 %v269, 124
    %v283 = vpop.permute.xlu0 %282
    %284 = vrot.lane.b32.xlu0 %v270, 124
    %v285 = vpop.permute.xlu0 %284
    %286 = vrot.lane.b32.xlu0 %v271, 124
    %v287 = vpop.permute.xlu0 %286
    %296 = vst.msk [vmem:[#allocation6 + $0x3] sm:$0x1] %vm148, %v273
    %297 = vst.msk [vmem:[#allocation6 + $0xb] sm:$0x1] %vm148, %v275
    %298 = vst.msk [vmem:[#allocation6 + $0x13] sm:$0x1] %vm148, %v277
    %299 = vst.msk [vmem:[#allocation6 + $0x1b] sm:$0x1] %vm148, %v279
    %300 = vst.msk [vmem:[#allocation6 + $0x23] sm:$0x1] %vm148, %v281
    %301 = vst.msk [vmem:[#allocation6 + $0x2b] sm:$0x1] %vm148, %v283
    %302 = vst.msk [vmem:[#allocation6 + $0x33] sm:$0x1] %vm148, %v285
    %303 = vst.msk [vmem:[#allocation6 + $0x3b] sm:$0x1] %vm148, %v287
    %v304 = vld [vmem:[#allocation2] sm:$0xff]
    %v306 = vrot.slane %v304, 1
    %v307 = vrot.slane %v304, 2
    %v308 = vrot.slane %v304, 3
    %v309 = vrot.slane %v304, 4
    %v310 = vrot.slane %v304, 5
    %v311 = vrot.slane %v304, 6
    %v312 = vrot.slane %v304, 7
    %v313 = vperm.slane %v304, 0
    %v314 = vperm.slane %v306, 0
    %v315 = vperm.slane %v307, 0
    %v316 = vperm.slane %v308, 0
    %v317 = vperm.slane %v309, 0
    %v318 = vperm.slane %v310, 0
    %v319 = vperm.slane %v311, 0
    %v320 = vperm.slane %v312, 0
    %321 = vrot.lane.b32.xlu0 %v313, 125
    %v322 = vpop.permute.xlu0 %321
    %323 = vrot.lane.b32.xlu0 %v314, 125
    %v324 = vpop.permute.xlu0 %323
    %325 = vrot.lane.b32.xlu0 %v315, 125
    %v326 = vpop.permute.xlu0 %325
    %327 = vrot.lane.b32.xlu0 %v316, 125
    %v328 = vpop.permute.xlu0 %327
    %329 = vrot.lane.b32.xlu0 %v317, 125
    %v330 = vpop.permute.xlu0 %329
    %331 = vrot.lane.b32.xlu0 %v318, 125
    %v332 = vpop.permute.xlu0 %331
    %333 = vrot.lane.b32.xlu0 %v319, 125
    %v334 = vpop.permute.xlu0 %333
    %335 = vrot.lane.b32.xlu0 %v320, 125
    %v336 = vpop.permute.xlu0 %335
    %345 = vst.msk [vmem:[#allocation6 + $0x4] sm:$0x1] %vm148, %v322
    %346 = vst.msk [vmem:[#allocation6 + $0xc] sm:$0x1] %vm148, %v324
    %347 = vst.msk [vmem:[#allocation6 + $0x14] sm:$0x1] %vm148, %v326
    %348 = vst.msk [vmem:[#allocation6 + $0x1c] sm:$0x1] %vm148, %v328
    %349 = vst.msk [vmem:[#allocation6 + $0x24] sm:$0x1] %vm148, %v330
    %350 = vst.msk [vmem:[#allocation6 + $0x2c] sm:$0x1] %vm148, %v332
    %351 = vst.msk [vmem:[#allocation6 + $0x34] sm:$0x1] %vm148, %v334
    %352 = vst.msk [vmem:[#allocation6 + $0x3c] sm:$0x1] %vm148, %v336
    %v353 = vld [vmem:[#allocation2] sm:$0xff]
    %v355 = vrot.slane %v353, 1
    %v356 = vrot.slane %v353, 2
    %v357 = vrot.slane %v353, 3
    %v358 = vrot.slane %v353, 4
    %v359 = vrot.slane %v353, 5
    %v360 = vrot.slane %v353, 6
    %v361 = vrot.slane %v353, 7
    %v362 = vperm.slane %v353, 0
    %v363 = vperm.slane %v355, 0
    %v364 = vperm.slane %v356, 0
    %v365 = vperm.slane %v357, 0
    %v366 = vperm.slane %v358, 0
    %v367 = vperm.slane %v359, 0
    %v368 = vperm.slane %v360, 0
    %v369 = vperm.slane %v361, 0
    %370 = vrot.lane.b32.xlu0 %v362, 126
    %v371 = vpop.permute.xlu0 %370
    %372 = vrot.lane.b32.xlu0 %v363, 126
    %v373 = vpop.permute.xlu0 %372
    %374 = vrot.lane.b32.xlu0 %v364, 126
    %v375 = vpop.permute.xlu0 %374
    %376 = vrot.lane.b32.xlu0 %v365, 126
    %v377 = vpop.permute.xlu0 %376
    %378 = vrot.lane.b32.xlu0 %v366, 126
    %v379 = vpop.permute.xlu0 %378
    %380 = vrot.lane.b32.xlu0 %v367, 126
    %v381 = vpop.permute.xlu0 %380
    %382 = vrot.lane.b32.xlu0 %v368, 126
    %v383 = vpop.permute.xlu0 %382
    %384 = vrot.lane.b32.xlu0 %v369, 126
    %v385 = vpop.permute.xlu0 %384
    %394 = vst.msk [vmem:[#allocation6 + $0x5] sm:$0x1] %vm148, %v371
    %395 = vst.msk [vmem:[#allocation6 + $0xd] sm:$0x1] %vm148, %v373
    %396 = vst.msk [vmem:[#allocation6 + $0x15] sm:$0x1] %vm148, %v375
    %397 = vst.msk [vmem:[#allocation6 + $0x1d] sm:$0x1] %vm148, %v377
    %398 = vst.msk [vmem:[#allocation6 + $0x25] sm:$0x1] %vm148, %v379
    %399 = vst.msk [vmem:[#allocation6 + $0x2d] sm:$0x1] %vm148, %v381
    %400 = vst.msk [vmem:[#allocation6 + $0x35] sm:$0x1] %vm148, %v383
    %401 = vst.msk [vmem:[#allocation6 + $0x3d] sm:$0x1] %vm148, %v385
    %v402 = vld [vmem:[#allocation2] sm:$0xff]
    %v404 = vrot.slane %v402, 1
    %v405 = vrot.slane %v402, 2
    %v406 = vrot.slane %v402, 3
    %v407 = vrot.slane %v402, 4
    %v408 = vrot.slane %v402, 5
    %v409 = vrot.slane %v402, 6
    %v410 = vrot.slane %v402, 7
    %v411 = vperm.slane %v402, 0
    %v412 = vperm.slane %v404, 0
    %v413 = vperm.slane %v405, 0
    %v414 = vperm.slane %v406, 0
    %v415 = vperm.slane %v407, 0
    %v416 = vperm.slane %v408, 0
    %v417 = vperm.slane %v409, 0
    %v418 = vperm.slane %v410, 0
    %419 = vrot.lane.b32.xlu0 %v411, 127
    %v420 = vpop.permute.xlu0 %419
    %421 = vrot.lane.b32.xlu0 %v412, 127
    %v422 = vpop.permute.xlu0 %421
    %423 = vrot.lane.b32.xlu0 %v413, 127
    %v424 = vpop.permute.xlu0 %423
    %425 = vrot.lane.b32.xlu0 %v414, 127
    %v426 = vpop.permute.xlu0 %425
    %427 = vrot.lane.b32.xlu0 %v415, 127
    %v428 = vpop.permute.xlu0 %427
    %429 = vrot.lane.b32.xlu0 %v416, 127
    %v430 = vpop.permute.xlu0 %429
    %431 = vrot.lane.b32.xlu0 %v417, 127
    %v432 = vpop.permute.xlu0 %431
    %433 = vrot.lane.b32.xlu0 %v418, 127
    %v434 = vpop.permute.xlu0 %433
    %443 = vst.msk [vmem:[#allocation6 + $0x6] sm:$0x1] %vm148, %v420
    %444 = vst.msk [vmem:[#allocation6 + $0xe] sm:$0x1] %vm148, %v422
    %445 = vst.msk [vmem:[#allocation6 + $0x16] sm:$0x1] %vm148, %v424
    %446 = vst.msk [vmem:[#allocation6 + $0x1e] sm:$0x1] %vm148, %v426
    %447 = vst.msk [vmem:[#allocation6 + $0x26] sm:$0x1] %vm148, %v428
    %448 = vst.msk [vmem:[#allocation6 + $0x2e] sm:$0x1] %vm148, %v430
    %449 = vst.msk [vmem:[#allocation6 + $0x36] sm:$0x1] %vm148, %v432
    %450 = vst.msk [vmem:[#allocation6 + $0x3e] sm:$0x1] %vm148, %v434
    %v451 = vld [vmem:[#allocation2] sm:$0xff]
    %v453 = vrot.slane %v451, 1
    %v454 = vrot.slane %v451, 2
    %v455 = vrot.slane %v451, 3
    %v456 = vrot.slane %v451, 4
    %v457 = vrot.slane %v451, 5
    %v458 = vrot.slane %v451, 6
    %v459 = vrot.slane %v451, 7
    %467 = vst.msk [vmem:[#allocation6 + $0x7] sm:$0x1] %vm148, %v451
    %468 = vst.msk [vmem:[#allocation6 + $0xf] sm:$0x1] %vm148, %v453
    %469 = vst.msk [vmem:[#allocation6 + $0x17] sm:$0x1] %vm148, %v454
    %470 = vst.msk [vmem:[#allocation6 + $0x1f] sm:$0x1] %vm148, %v455
    %471 = vst.msk [vmem:[#allocation6 + $0x27] sm:$0x1] %vm148, %v456
    %472 = vst.msk [vmem:[#allocation6 + $0x2f] sm:$0x1] %vm148, %v457
    %473 = vst.msk [vmem:[#allocation6 + $0x37] sm:$0x1] %vm148, %v458
    %474 = vst.msk [vmem:[#allocation6 + $0x3f] sm:$0x1] %vm148, %v459
    // Predicated region
    $region10: #{tpu_custom_call.1} parent=1 // pred_check
      _
    $region11: #{tpu_custom_call.1} parent=1 // pred_check_branch
      %476 = sbr.rel (0) target = $region13
    $region12: #{tpu_custom_call.1} parent=1 // pred_region
      %478 = vsyncadd [#allocation5], 0
      %s479 = sshll.u32 [#allocation6], 4
      %s480 = int_to_ptr.vmem [resolvable:$true] %s479
      %s481 = sshll.u32 %s1, 4
      %s482 = int_to_ptr.hbm [resolvable:$true] %s481
      %487 = dma.vmem_to_hbm [thread:$0]  %s480, 1024, %s482, [#allocation5], 128, 128, 8
    $region13: #{tpu_custom_call.1} parent=1 // pred_fallthru
      _
    // Predicated region
    $region14: #{tpu_custom_call.1} parent=1 // pred_check
      _
    $region15: #{tpu_custom_call.1} parent=1 // pred_check_branch
      %489 = sbr.rel (0) target = $region17
    $region16: #{tpu_custom_call.1} parent=1 // pred_region
      %491 = dma.done [#allocation5], 1024
    $region17: #{tpu_custom_call.1} parent=1 // pred_fallthru
      _
    %492 = vsyncpa [#allocation4], 1
    %493 = vsyncpa [#allocation5], 1

</llo_original>
